<compile_context>
chip_gen: v7x
topology: tpu7x:2x2x1
jax: 0.10.0
libtpu: 0.0.40
codegen_flags: <defaults>
</compile_context>

<pallas_src>
import functools

import jax
import jax.numpy as jnp
from jax.experimental import pallas as pl
from jax.experimental.pallas import tpu as pltpu

_LANES = 128
_SUBLANES = 8
_MAX_BLOCK_ROWS = 16384          # hard cap on rows per pipeline step
_VMEM_BUDGET_BYTES = 24 << 20    # double-buffered input streams must fit here
_VMEM_LIMIT_BYTES = 32 << 20     # scoped VMEM request (OK on v5e/v6e/v7x)


def _round_up(x, m):
    return ((x + m - 1) // m) * m


def _erf(x):
    """Abramowitz & Stegun 7.1.26 erf approximation (max abs err ~1.5e-7).

    Built from exp + a degree-5 polynomial so it lowers in Mosaic without an
    erf primitive; the exp lands on the otherwise-idle EUP slot.
    """
    p = 0.3275911
    a1, a2, a3, a4, a5 = (0.254829592, -0.284496736, 1.421413741,
                          -1.453152027, 1.061405429)
    ax = jnp.abs(x)
    t = 1.0 / (1.0 + p * ax)
    poly = t * (a1 + t * (a2 + t * (a3 + t * (a4 + t * a5))))
    y = 1.0 - poly * jnp.exp(-(ax * ax))
    return jnp.where(x >= 0.0, y, -y)


# ---------------------------------------------------------------------------
# Kernels
# ---------------------------------------------------------------------------

def _hlgauss_ce_kernel(nrows_ref, logits_ref, target_ref, weight_ref, out_ref):
    """One batch tile of weighted soft-target CE (target probs streamed in)."""
    i = pl.program_id(0)

    x = logits_ref[...].astype(jnp.float32)   # (tn, C)
    t = target_ref[...].astype(jnp.float32)   # (tn, C)
    w = weight_ref[...].astype(jnp.float32)   # (1, C)

    tn = x.shape[0]
    row = i * tn + jax.lax.broadcasted_iota(jnp.int32, (tn, 1), 0)
    valid = row < nrows_ref[0]
    # zero-out tail rows up front so padded garbage never reaches exp/log
    x = jnp.where(valid, x, 0.0)
    t = jnp.where(valid, t, 0.0)

    # numerically-stable logsumexp along the class (lane) axis
    m = jnp.max(x, axis=-1, keepdims=True)                               # (tn, 1)
    lse = m + jnp.log(jnp.sum(jnp.exp(x - m), axis=-1, keepdims=True))   # (tn, 1)

    # single lane reduction: -sum_c w*t*log_softmax(x) == sum_c w*t*(lse - x)
    per_row = jnp.sum((w * t) * (lse - x), axis=-1, keepdims=True)       # (tn, 1)

    # lane-dense (1,1,128) partial-sum block per grid step: unmasked stores and
    # independent output blocks => grid axis stays "parallel" (v7x 2 TCs).
    out_ref[...] = jnp.full(out_ref.shape, jnp.sum(per_row), dtype=jnp.float32)


def _hlgauss_fused_kernel(nrows_ref, logits_ref, tgt_ref, slo_ref, shi_ref,
                          w_ref, out_ref, *, inv_k, min_value, max_value):
    """Fused tile kernel: builds HL-Gauss soft targets in-VMEM (erf CDF
    differences) from the scalar regression targets, then weighted CE.
    Removes the (N, C) target-probs HBM stream entirely."""
    i = pl.program_id(0)

    x = logits_ref[...].astype(jnp.float32)    # (tn, C)
    tv = tgt_ref[...].astype(jnp.float32)      # (tn, 1) scalar targets
    slo = slo_ref[...].astype(jnp.float32)     # (1, C)  left bin edges
    shi = shi_ref[...].astype(jnp.float32)     # (1, C)  right bin edges
    w = w_ref[...].astype(jnp.float32)         # (1, C)

    tn = x.shape[0]
    row = i * tn + jax.lax.broadcasted_iota(jnp.int32, (tn, 1), 0)
    valid = row < nrows_ref[0]
    x = jnp.where(valid, x, 0.0)
    tv = jnp.where(valid, tv, 0.0)

    # soft-target bin probabilities (erf CDF differences, normalized by z)
    cdf_hi = _erf((shi - tv) * inv_k)          # (tn, C)
    cdf_lo = _erf((slo - tv) * inv_k)          # (tn, C)
    z = _erf((max_value - tv) * inv_k) - _erf((min_value - tv) * inv_k)  # (tn, 1)
    t = (cdf_hi - cdf_lo) / z

    m = jnp.max(x, axis=-1, keepdims=True)
    lse = m + jnp.log(jnp.sum(jnp.exp(x - m), axis=-1, keepdims=True))
    per_row = jnp.sum((w * t) * (lse - x), axis=-1, keepdims=True)
    per_row = jnp.where(valid, per_row, 0.0)   # t is nonzero on padded rows

    out_ref[...] = jnp.full(out_ref.shape, jnp.sum(per_row), dtype=jnp.float32)


# ---------------------------------------------------------------------------
# Tiling
# ---------------------------------------------------------------------------

def _pick_block_rows(n, row_streams, cap):
    """Pick sublane-aligned rows per tile.

    row_streams: (lane_width, itemsize) per batch-tiled input stream.
    Accounts for lane padding (ceil(lanes/128)*128) and double buffering.
    """
    per_row_bytes = 2 * sum(_round_up(lanes, _LANES) * itemsize
                            for lanes, itemsize in row_streams)
    rows = max(_SUBLANES, min(cap, _VMEM_BUDGET_BYTES // per_row_bytes))
    rows = max(_SUBLANES, (rows // _SUBLANES) * _SUBLANES)
    if n < 2 * _SUBLANES:
        return n                 # single full tile; too small to split
    # guarantee >= 2 tiles so the "parallel" grid axis feeds both v7x TCs
    half = _round_up(pl.cdiv(n, 2), _SUBLANES)
    return max(_SUBLANES, min(rows, half))


# ---------------------------------------------------------------------------
# Wrappers
# ---------------------------------------------------------------------------

@functools.partial(jax.jit, static_argnames=("block_rows",))
def hlgauss_cross_entropy(logits, target_probs, weights, *, block_rows=None):
    """mean_n [ -sum_c w_c * t_nc * log_softmax(logits)_nc ] (PyTorch semantics).

    Inputs stream in their native dtype (bf16 logits/targets stay bf16 in HBM);
    all in-kernel math is f32.
    """
    n, c = logits.shape
    cap = _MAX_BLOCK_ROWS if block_rows is None else int(block_rows)
    tn = _pick_block_rows(
        n,
        [(c, jnp.dtype(logits.dtype).itemsize),
         (c, jnp.dtype(target_probs.dtype).itemsize)],
        cap)
    num_tiles = pl.cdiv(n, tn)

    w2d = weights.reshape(1, c).astype(jnp.float32)
    nrows = jnp.array([n], dtype=jnp.int32)

    partials = pl.pallas_call(
        _hlgauss_ce_kernel,
        out_shape=jax.ShapeDtypeStruct((num_tiles, 1, _LANES), jnp.float32),
        grid_spec=pltpu.PrefetchScalarGridSpec(
            num_scalar_prefetch=1,
            grid=(num_tiles,),
            in_specs=[
                pl.BlockSpec((tn, c), lambda i, nr: (i, 0)),
                pl.BlockSpec((tn, c), lambda i, nr: (i, 0)),
                pl.BlockSpec((1, c), lambda i, nr: (0, 0)),
            ],
            out_specs=pl.BlockSpec((1, 1, _LANES), lambda i, nr: (i, 0, 0)),
        ),
        compiler_params=pltpu.CompilerParams(
            dimension_semantics=("parallel",),
            vmem_limit_bytes=_VMEM_LIMIT_BYTES),
    )(nrows, logits, target_probs, w2d)

    # tiny final reduction in plain JAX; divisor is the global N (tail masked).
    return jnp.sum(partials[:, 0, 0]) / n


@functools.partial(
    jax.jit, static_argnames=("sigma", "min_value", "max_value", "block_rows"))
def hlgauss_loss_from_scalar(logits, target, support, weights, *, sigma,
                             min_value, max_value, block_rows=None):
    """Fused HL-Gauss loss: soft-target construction (erf) runs inside the
    kernel, so only logits (N,C) + scalar targets (N,1) stream from HBM."""
    n, c = logits.shape
    cap = _MAX_BLOCK_ROWS if block_rows is None else int(block_rows)
    tn = _pick_block_rows(
        n, [(c, jnp.dtype(logits.dtype).itemsize), (1, 4)], cap)
    num_tiles = pl.cdiv(n, tn)

    tgt = target.reshape(n, 1).astype(jnp.float32)
    slo = support[:-1].reshape(1, c).astype(jnp.float32)
    shi = support[1:].reshape(1, c).astype(jnp.float32)
    w2d = weights.reshape(1, c).astype(jnp.float32)
    nrows = jnp.array([n], dtype=jnp.int32)

    kernel = functools.partial(
        _hlgauss_fused_kernel,
        inv_k=float(1.0 / ((2.0 ** 0.5) * sigma)),
        min_value=float(min_value),
        max_value=float(max_value))

    partials = pl.pallas_call(
        kernel,
        out_shape=jax.ShapeDtypeStruct((num_tiles, 1, _LANES), jnp.float32),
        grid_spec=pltpu.PrefetchScalarGridSpec(
            num_scalar_prefetch=1,
            grid=(num_tiles,),
            in_specs=[
                pl.BlockSpec((tn, c), lambda i, nr: (i, 0)),
                pl.BlockSpec((tn, 1), lambda i, nr: (i, 0)),
                pl.BlockSpec((1, c), lambda i, nr: (0, 0)),
                pl.BlockSpec((1, c), lambda i, nr: (0, 0)),
                pl.BlockSpec((1, c), lambda i, nr: (0, 0)),
            ],
            out_specs=pl.BlockSpec((1, 1, _LANES), lambda i, nr: (i, 0, 0)),
        ),
        compiler_params=pltpu.CompilerParams(
            dimension_semantics=("parallel",),
            vmem_limit_bytes=_VMEM_LIMIT_BYTES),
    )(nrows, logits, tgt, slo, shi, w2d)

    return jnp.sum(partials[:, 0, 0]) / n


# ---------------------------------------------------------------------------
# Module
# ---------------------------------------------------------------------------

class HLGaussLoss:
    """JAX/Pallas port of the PyTorch HLGaussLoss module (forward = weighted CE)."""

    def __init__(self, min_value, max_value, num_bins, sigma, weights=None):
        self.min_value = float(min_value)
        self.max_value = float(max_value)
        self.num_bins = int(num_bins)
        self.sigma = float(sigma)
        self.support = jnp.linspace(min_value, max_value, num_bins + 1,
                                    dtype=jnp.float32)
        if weights is None:
            weights = jnp.ones((num_bins,), dtype=jnp.float32)
        self.weights = jnp.asarray(weights, dtype=jnp.float32)

    def forward(self, logits, target):
        # original forward semantics: target is a (N, C) soft-probability tensor
        return hlgauss_cross_entropy(logits, target, self.weights)

    def __call__(self, logits, target):
        return self.forward(logits, target)

    def loss_from_scalar_target(self, logits, scalar_target):
        # fused hot path: transform_to_probs + weighted CE in one kernel
        return hlgauss_loss_from_scalar(
            logits, scalar_target, self.support, self.weights,
            sigma=self.sigma, min_value=self.min_value,
            max_value=self.max_value)

    # glue (pure JAX), kept for API parity with the PyTorch module
    def transform_to_probs(self, target):
        cdf = jax.scipy.special.erf(
            (self.support - target[..., None])
            / (jnp.sqrt(2.0) * self.sigma))
        z = cdf[..., -1] - cdf[..., 0]
        bin_probs = cdf[..., 1:] - cdf[..., :-1]
        return bin_probs / z[..., None]

    def transform_from_probs(self, probs):
        centers = (self.support[:-1] + self.support[1:]) / 2.0
        return jnp.sum(probs * centers, axis=-1)


def _ref_loss(logits, target_probs, weights):
    log_p = jax.nn.log_softmax(logits.astype(jnp.float32), axis=-1)
    return jnp.mean(
        -jnp.sum(weights[None, :] * target_probs.astype(jnp.float32) * log_p,
                 axis=-1))


if __name__ == "__main__":
    # small, deterministic setup
    N = 8          # batch
    NUM_BINS = 32  # classes C
    loss_mod = HLGaussLoss(min_value=-1.0, max_value=1.0,
                           num_bins=NUM_BINS, sigma=0.1)

    key = jax.random.PRNGKey(0)
    k_logits, k_vals, k_extra = jax.random.split(key, 3)
    logits = jax.random.normal(k_logits, (N, NUM_BINS), dtype=jnp.float32)
    scalar_targets = jax.random.uniform(k_vals, (N,), dtype=jnp.float32,
                                        minval=-0.9, maxval=0.9)
    target_probs = loss_mod.transform_to_probs(scalar_targets)  # (N, NUM_BINS)

    loss = loss_mod(logits, target_probs)
    jax.block_until_ready(loss)
    ref = _ref_loss(logits, target_probs, loss_mod.weights)
    assert jnp.allclose(loss, ref, rtol=1e-5, atol=1e-5), (loss, ref)

    # exercise the multi-tile + in-kernel tail-masking path (4 tiles of 64 rows)
    N2 = 200
    logits2 = jax.random.normal(k_extra, (N2, NUM_BINS), dtype=jnp.float32)
    scalar2 = jax.random.uniform(jax.random.PRNGKey(1), (N2,), dtype=jnp.float32,
                                 minval=-0.9, maxval=0.9)
    probs2 = loss_mod.transform_to_probs(scalar2)
    loss2 = hlgauss_cross_entropy(logits2, probs2, loss_mod.weights,
                                  block_rows=64)
    jax.block_until_ready(loss2)
    ref2 = _ref_loss(logits2, probs2, loss_mod.weights)
    assert jnp.allclose(loss2, ref2, rtol=1e-5, atol=1e-5), (loss2, ref2)

    # fused path (erf soft-target construction inside the kernel); uses the
    # default tile picker -> 2 tiles of 104 rows (both v7x TCs get work).
    # Tolerance is looser because the in-kernel erf is an approximation.
    loss_fused = loss_mod.loss_from_scalar_target(logits2, scalar2)
    jax.block_until_ready(loss_fused)
    assert jnp.allclose(loss_fused, ref2, rtol=5e-4, atol=5e-4), (loss_fused, ref2)

    print("KERNEL_OK")
</pallas_src>

<mosaic_0001>
module attributes {stable_mosaic.version = 11 : i64} {
  func.func @_hlgauss_ce_kernel(%arg0: i32, %arg1: memref<1xi32, #tpu.memory_space<smem>>, %arg2: memref<8x32xf32, #tpu.memory_space<vmem>>, %arg3: memref<8x32xf32, #tpu.memory_space<vmem>>, %arg4: memref<1x32xf32, #tpu.memory_space<vmem>>, %arg5: memref<1x1x128xf32, #tpu.memory_space<vmem>>) attributes {dimension_semantics = [#tpu.dimension_semantics<parallel>], iteration_bounds = array<i64: 1>, scalar_prefetch = 1 : i64, scratch_operands = 0 : i64, tpu.core_type = #tpu.core_type<tc>, window_params = [{transform_indices = @transform_0, window_bounds = array<i64: 8, 32>}, {transform_indices = @transform_1, window_bounds = array<i64: 8, 32>}, {pipeline_mode = #tpu.pipeline_mode<synchronous>, transform_indices = @transform_2, window_bounds = array<i64: 1, 32>}, {transform_indices = @transform_3, window_bounds = array<i64: 1, 1, 128>}]} {
    %c0 = arith.constant 0 : index
    %c0_0 = arith.constant 0 : index
    %0 = vector.load %arg2[%c0, %c0_0] : memref<8x32xf32, #tpu.memory_space<vmem>>, vector<8x32xf32>
    %c0_1 = arith.constant 0 : index
    %c0_2 = arith.constant 0 : index
    %1 = vector.load %arg3[%c0_1, %c0_2] : memref<8x32xf32, #tpu.memory_space<vmem>>, vector<8x32xf32>
    %c0_3 = arith.constant 0 : index
    %c0_4 = arith.constant 0 : index
    %2 = vector.load %arg4[%c0_3, %c0_4] : memref<1x32xf32, #tpu.memory_space<vmem>>, vector<1x32xf32>
    %c8_i32 = arith.constant 8 : i32
    %3 = arith.muli %arg0, %c8_i32 : i32
    %4 = tpu.iota {dimensions = array<i32: 0>} : vector<8x1xi32>
    %5 = vector.broadcast %3 : i32 to vector<8x1xi32>
    %6 = arith.addi %5, %4 : vector<8x1xi32>
    %c0_5 = arith.constant 0 : index
    %7 = memref.load %arg1[%c0_5] : memref<1xi32, #tpu.memory_space<smem>>
    %8 = vector.broadcast %7 : i32 to vector<8x1xi32>
    %9 = arith.cmpi slt, %6, %8 : vector<8x1xi32>
    %cst = arith.constant 0.000000e+00 : f32
    %10 = vector.shape_cast %9 : vector<8x1xi1> to vector<8x1xi1>
    %11 = vector.broadcast %10 : vector<8x1xi1> to vector<8x32xi1>
    %12 = vector.broadcast %cst : f32 to vector<8x32xf32>
    %13 = arith.select %11, %0, %12 : vector<8x32xi1>, vector<8x32xf32>
    %cst_6 = arith.constant 0.000000e+00 : f32
    %14 = vector.shape_cast %9 : vector<8x1xi1> to vector<8x1xi1>
    %15 = vector.broadcast %14 : vector<8x1xi1> to vector<8x32xi1>
    %16 = vector.broadcast %cst_6 : f32 to vector<8x32xf32>
    %17 = arith.select %15, %1, %16 : vector<8x32xi1>, vector<8x32xf32>
    %cst_7 = arith.constant dense<0xFF800000> : vector<8xf32>
    %18 = vector.multi_reduction <maximumf>, %13, %cst_7 [1] : vector<8x32xf32> to vector<8xf32>
    %19 = vector.shape_cast %18 : vector<8xf32> to vector<8x1xf32>
    %20 = vector.broadcast %19 : vector<8x1xf32> to vector<8x32xf32>
    %21 = arith.subf %13, %20 : vector<8x32xf32>
    %22 = math.exp %21 : vector<8x32xf32>
    %cst_8 = arith.constant dense<0.000000e+00> : vector<8xf32>
    %23 = vector.multi_reduction <add>, %22, %cst_8 [1] : vector<8x32xf32> to vector<8xf32>
    %24 = vector.shape_cast %23 : vector<8xf32> to vector<8x1xf32>
    %25 = math.log %24 : vector<8x1xf32>
    %26 = arith.addf %19, %25 : vector<8x1xf32>
    %27 = vector.broadcast %2 : vector<1x32xf32> to vector<8x32xf32>
    %28 = arith.mulf %27, %17 : vector<8x32xf32>
    %29 = vector.broadcast %26 : vector<8x1xf32> to vector<8x32xf32>
    %30 = arith.subf %29, %13 : vector<8x32xf32>
    %31 = arith.mulf %28, %30 : vector<8x32xf32>
    %cst_9 = arith.constant dense<0.000000e+00> : vector<8xf32>
    %32 = vector.multi_reduction <add>, %31, %cst_9 [1] : vector<8x32xf32> to vector<8xf32>
    %33 = vector.shape_cast %32 : vector<8xf32> to vector<8x1xf32>
    %34 = vector.shape_cast %33 : vector<8x1xf32> to vector<1x8x1xf32>
    %cst_10 = arith.constant dense<0.000000e+00> : vector<1xf32>
    %35 = vector.multi_reduction <add>, %34, %cst_10 [1, 2] : vector<1x8x1xf32> to vector<1xf32>
    %36 = vector.shape_cast %35 : vector<1xf32> to vector<1x1x1xf32>
    %37 = vector.extract %36[0, 0, 0] : f32 from vector<1x1x1xf32>
    %38 = vector.broadcast %37 : f32 to vector<1x1x128xf32>
    %c0_11 = arith.constant 0 : index
    %c0_12 = arith.constant 0 : index
    %c0_13 = arith.constant 0 : index
    %39 = vector.load %arg5[%c0_11, %c0_12, %c0_13] : memref<1x1x128xf32, #tpu.memory_space<vmem>>, vector<1x1x128xf32>
    tpu.vector_store %arg5[%c0_11, %c0_12, %c0_13], %38 {strides = array<i32>} : memref<1x1x128xf32, #tpu.memory_space<vmem>>, vector<1x1x128xf32>,
    return
  }
  func.func @transform_0(%arg0: i32, %arg1: memref<1xi32, #tpu.memory_space<smem>>) -> (i32, i32) {
    %c0_i32 = arith.constant 0 : i32
    %c0_i32_0 = arith.constant 0 : i32
    return %arg0, %c0_i32 : i32, i32
  }
  func.func @transform_1(%arg0: i32, %arg1: memref<1xi32, #tpu.memory_space<smem>>) -> (i32, i32) {
    %c0_i32 = arith.constant 0 : i32
    %c0_i32_0 = arith.constant 0 : i32
    return %arg0, %c0_i32 : i32, i32
  }
  func.func @transform_2(%arg0: i32, %arg1: memref<1xi32, #tpu.memory_space<smem>>) -> (i32, i32) {
    %c0_i32 = arith.constant 0 : i32
    %c0_i32_0 = arith.constant 0 : i32
    %c0_i32_1 = arith.constant 0 : i32
    return %c0_i32, %c0_i32_0 : i32, i32
  }
  func.func @transform_3(%arg0: i32, %arg1: memref<1xi32, #tpu.memory_space<smem>>) -> (i32, i32, i32) {
    %c0_i32 = arith.constant 0 : i32
    %c0_i32_0 = arith.constant 0 : i32
    %c0_i32_1 = arith.constant 0 : i32
    return %arg0, %c0_i32, %c0_i32_0 : i32, i32, i32
  }
}

</mosaic_0001>

<llo_original>
// kernel: hlgauss_cross_entropy.1
$region0: #{hlgauss_cross_entropy.1}
  #allocation0 [shape = 'u32[]', space=smem, size = 0x4, offset = 0x4, fixed_abs, tag = 'smem constant byte address 0x4 - core index']
  #allocation1 [shape = 'u32[144,128]{1,0:T(1,128)}', space=vmem, size = 0x12000, scoped, tag = 'internal scratch']
  #allocation2 [shape = 's32[1]{0}', space=sflag, size = 0x4, scoped, tag = 'scoped memory for hlgauss_cross_entropy.1']
  #allocation3 [shape = 's32[1]{0:T(128)S(6)}', space=smem, size = 0x200, scoped, tag = 'prefetched SMEM operand 0']
  %s0 = inlined_call_operand.<no memory space> [shape: s32[1], index: 0, kind: input, shape index: {}]
  %s1 = inlined_call_operand.hbm [shape: f32[8,32], index: 1, kind: input, shape index: {}]
  %s2 = inlined_call_operand.hbm [shape: f32[8,32], index: 2, kind: input, shape index: {}]
  %s3 = inlined_call_operand.vmem [shape: f32[1,32], index: 3, kind: input, shape index: {}]
  %s4 = inlined_call_operand.vmem [shape: f32[1,1,128], index: 4, kind: output, shape index: {}]
  %s5 = sld [smem:[#allocation0]]
  $region30: #{hlgauss_cross_entropy.1} parent=0
    _
  %s7 = ssub.s32 1, %s5
  %s8 = scalar_select 0, %s7, %s5
  %9 = sst [smem:[#allocation3]] %s0
  $region1: #{hlgauss_cross_entropy.1} parent=0
    #allocation4 [shape = 'u8[4096]{0}', space=vmem, size = 0x1000, scoped, tag = 'input window, operand 1, single buffered']
    #allocation5 [shape = 's32[1]{0}', space=sflag, size = 0x4, scoped, tag = 'scoped memory for hlgauss_cross_entropy.1']
    #allocation6 [shape = 'u8[4096]{0}', space=vmem, size = 0x1000, scoped, tag = 'input window, operand 2, single buffered']
    #allocation7 [shape = 's32[1]{0}', space=sflag, size = 0x4, scoped, tag = 'scoped memory for hlgauss_cross_entropy.1']
    %10 = vsyncpa [#allocation5], 0
    %11 = vsyncpa [#allocation7], 0
    // Predicated region
    $region2: #{hlgauss_cross_entropy.1} parent=1 // pred_check
      _
    $region3: #{hlgauss_cross_entropy.1} parent=1 // pred_check_branch
      %13 = sbr.rel (0) target = $region5
    $region4: #{hlgauss_cross_entropy.1} parent=1 // pred_region
      %s15 = ssub.s32 128, 128
      %16 = vsyncadd [#allocation5], %s15
      %s18 = sshll.u32 [#allocation4], 4
      %s19 = int_to_ptr.vmem [resolvable:$true] %s18
      %21 = dma.hbm_to_vmem [thread:$0]  %s1, 128, %s19, [#allocation5]
    $region5: #{hlgauss_cross_entropy.1} parent=1 // pred_fallthru
      _
    // Predicated region
    $region6: #{hlgauss_cross_entropy.1} parent=1 // pred_check
      _
    $region7: #{hlgauss_cross_entropy.1} parent=1 // pred_check_branch
      %23 = sbr.rel (0) target = $region9
    $region8: #{hlgauss_cross_entropy.1} parent=1 // pred_region
      %s25 = ssub.s32 128, 128
      %26 = vsyncadd [#allocation7], %s25
      %s28 = sshll.u32 [#allocation6], 4
      %s29 = int_to_ptr.vmem [resolvable:$true] %s28
      %31 = dma.hbm_to_vmem [thread:$0]  %s2, 128, %s29, [#allocation7]
    $region9: #{hlgauss_cross_entropy.1} parent=1 // pred_fallthru
      _
    // Predicated region
    $region10: #{hlgauss_cross_entropy.1} parent=1 // pred_check
      _
    $region11: #{hlgauss_cross_entropy.1} parent=1 // pred_check_branch
      %33 = sbr.rel (0) target = $region13
    $region12: #{hlgauss_cross_entropy.1} parent=1 // pred_region
      _
    $region13: #{hlgauss_cross_entropy.1} parent=1 // pred_fallthru
      _
    // Predicated region
    $region14: #{hlgauss_cross_entropy.1} parent=1 // pred_check
      _
    $region15: #{hlgauss_cross_entropy.1} parent=1 // pred_check_branch
      %35 = sbr.rel (0) target = $region17
    $region16: #{hlgauss_cross_entropy.1} parent=1 // pred_region
      %36 = dma.done [#allocation5], 128
    $region17: #{hlgauss_cross_entropy.1} parent=1 // pred_fallthru
      _
    // Predicated region
    $region18: #{hlgauss_cross_entropy.1} parent=1 // pred_check
      _
    $region19: #{hlgauss_cross_entropy.1} parent=1 // pred_check_branch
      %38 = sbr.rel (0) target = $region21
    $region20: #{hlgauss_cross_entropy.1} parent=1 // pred_region
      %39 = dma.done [#allocation7], 128
    $region21: #{hlgauss_cross_entropy.1} parent=1 // pred_fallthru
      _
    %v40 = vld [vmem:[#allocation4] sm:$0xff]
    %v41 = vld [vmem:[#allocation6] sm:$0xff]
    %v42 = vld [vmem:[%s3] sm:$0x1]
    %s43 = smul.u32 0, 8
    %v44 = vlaneseq
    %v45 = vshrl.u32 %v44, 7
    %v46 = vstv %s43
    %v47 = vadd.s32 %v46, %v45
    %s48 = sld [smem:[#allocation3]]
    %v49 = vstv %s48
    %vm50 = vcmp.lt.s32.totalorder %v47, %v49
    %v51 = vsel %vm50, 1, 0
    %vm52 = vcmp.eq.s32.totalorder %v51, 1
    %v53 = vsel %vm52, %v40, 0.0
    %v54 = vsel %vm52, %v41, 0.0
    %vm55 = vcmask 261120
    %v56 = vsel %vm55, %v53, -inf
    %57 = vmax.xlane.f32.xlu0 %v56
    %v58 = vpop.xlane.xlu0 %57
    %v59 = vsub.f32 %v53, %v58
    %v60 = vmul.f32 %v59, 1.442695
    %v61 = vpow.pop %v60
    %v62 = vsel %vm55, %v61, 0.0
    %63 = vadd.xlane.f32.xlu0 %v62
    %v64 = vpop.xlane.xlu0 %63
    %v65 = vlog2.pop %v64
    %v66 = vmul.f32 %v65, 0.6931472
    %v67 = vadd.f32 %v58, %v66
    %v69 = vlaneseq
    %v70 = vshrl.u32 %v69, 7
    %v71 = vsub.s32 0, %v70
    %v72 = vrot.slane %v42, %v71
    %v74 = vmul.f32 %v72, %v54
    %v75 = vsub.f32 %v67, %v53
    %v76 = vmul.f32 %v74, %v75
    %v77 = vsel %vm55, %v76, 0.0
    %78 = vadd.xlane.f32.xlu0 %v77
    %v79 = vpop.xlane.xlu0 %78
    %vm80 = vcmask 7168
    %v81 = vsel %vm80, %v79, 0.0
    %82 = vadd.xlane.f32.xlu0 %v81
    %v83 = vpop.xlane.xlu0 %82
    %v84 = vrot.slane %v83, 4
    %v85 = vadd.f32 %v83, %v84
    %v86 = vrot.slane %v85, 2
    %v87 = vadd.f32 %v85, %v86
    %v88 = vrot.slane %v87, 1
    %v89 = vadd.f32 %v87, %v88
    %s90 = vtos %v89
    %v91 = vstv %s90
    %92 = vst [vmem:[%s4] sm:$0x1] %v91
    // Predicated region
    $region22: #{hlgauss_cross_entropy.1} parent=1 // pred_check
      _
    $region23: #{hlgauss_cross_entropy.1} parent=1 // pred_check_branch
      %94 = sbr.rel (0) target = $region25
    $region24: #{hlgauss_cross_entropy.1} parent=1 // pred_region
      _
    $region25: #{hlgauss_cross_entropy.1} parent=1 // pred_fallthru
      _
    // Predicated region
    $region26: #{hlgauss_cross_entropy.1} parent=1 // pred_check
      _
    $region27: #{hlgauss_cross_entropy.1} parent=1 // pred_check_branch
      %96 = sbr.rel (0) target = $region29
    $region28: #{hlgauss_cross_entropy.1} parent=1 // pred_region
      _
    $region29: #{hlgauss_cross_entropy.1} parent=1 // pred_fallthru
      _
    %97 = vsyncpa [#allocation5], 1
    %98 = vsyncpa [#allocation7], 1

</llo_original>
